<compile_context>
chip_gen: v7x
topology: tpu7x:2x2x1
jax: 0.10.0
libtpu: 0.0.40
codegen_flags: <defaults>
</compile_context>

<pallas_src>
import math

import jax
import jax.numpy as jnp
from jax.experimental import pallas as pl
from jax.experimental.pallas import tpu as pltpu

# bf16-representable sentinel for +/-inf (torch uses float32 max, which would
# overflow to inf when the operand is cast to bf16 for the single-pass MXU).
_BF16_MAX = float(jnp.finfo(jnp.bfloat16).max)


def _round_up(n, m):
    return -(-n // m) * m


def _vmem_limit_bytes():
    """Generation-aware scoped-VMEM limit: ~7/8 of physical, capped at 112 MiB
    (v5e/v6e: 128 MiB physical -> 112 MiB; v7x: 64 MiB/TC -> 56 MiB)."""
    default = 48 * 1024 * 1024
    try:
        cap = getattr(pltpu.get_tpu_info(), "vmem_capacity_bytes", None)
        if not cap:
            return default
        return int(min(int(cap) * 7 // 8, 112 * 1024 * 1024))
    except Exception:
        return default


# ----------------------------------------------------------------------------
# Pass 1: per-(batch, feature) indicator statistics over the sequence axis.
# View is (S, B*F); each column is one (b, f) pair; block is (S, tile_c).
# ----------------------------------------------------------------------------
def _stats_kernel(x_ref, mean_ref, rstd_ref):
    x = x_ref[...]                                   # (S, tile_c) f32
    s = x.shape[0]

    is_nan = jnp.isnan(x)
    is_inf = jnp.isinf(x)
    # indicator: nan -> -1, +inf -> +1, -inf -> +2, finite -> 0
    ind = jnp.where(
        is_nan, jnp.float32(-1.0),
        jnp.where(is_inf,
                  jnp.where(x > 0, jnp.float32(1.0), jnp.float32(2.0)),
                  jnp.float32(0.0)))

    mean = jnp.mean(ind, axis=0, keepdims=True)                        # (1, tile_c)
    # unbiased sample variance (N-1), guarded for S == 1 (norm is 0 there anyway)
    denom = jnp.float32(max(s - 1, 1))
    var = jnp.sum((ind - mean) ** 2, axis=0, keepdims=True) / denom
    std = jnp.sqrt(var) + jnp.float32(1e-6)
    mean_ref[...] = mean
    rstd_ref[...] = jnp.float32(1.0) / std


# ----------------------------------------------------------------------------
# Pass 2: fused nan_to_num + indicator-normalize + split-weight Linear.
# Rows view (S*B, F); weights / bias / seq-tiled stats stay VMEM-resident.
# ----------------------------------------------------------------------------
def _encode_kernel(x_ref, mean_ref, rstd_ref, wc_ref, wn_ref, b_ref, o_ref):
    x = x_ref[...]                                   # (tile_r, F) f32
    is_nan = jnp.isnan(x)
    is_inf = jnp.isinf(x)

    # torch.nan_to_num(x, nan=0.0) with a bf16-safe +/-inf sentinel so the
    # value stays finite through the single-pass bf16 MXU cast.
    clean = jnp.clip(jnp.where(is_nan, jnp.float32(0.0), x),
                     jnp.float32(-_BF16_MAX), jnp.float32(_BF16_MAX))
    # indicator recomputed on the fly (never written to HBM)
    ind = jnp.where(
        is_nan, jnp.float32(-1.0),
        jnp.where(is_inf,
                  jnp.where(x > 0, jnp.float32(1.0), jnp.float32(2.0)),
                  jnp.float32(0.0)))
    norm = jnp.clip((ind - mean_ref[...]) * rstd_ref[...], -100.0, 100.0)

    # single-pass bf16 MXU matmuls, f32 accumulation
    out = (jnp.dot(clean.astype(jnp.bfloat16), wc_ref[...],
                   preferred_element_type=jnp.float32)
           + jnp.dot(norm.astype(jnp.bfloat16), wn_ref[...],
                     preferred_element_type=jnp.float32)
           + b_ref[...])
    o_ref[...] = out.astype(o_ref.dtype)


# ----------------------------------------------------------------------------
# Tile selection (VMEM-budget derived; >= 2 grid steps whenever possible).
# ----------------------------------------------------------------------------
def _pick_col_tile(S, BF, vmem_limit):
    if BF <= 128:
        return BF
    budget = vmem_limit * 3 // 4
    # double-buffered (S, tile_c) f32 input blocks dominate pass-1 VMEM
    max_c = (budget // (2 * 4 * S)) // 128 * 128
    # TODO(synk): chunked-S grid with running-moment accumulators if even
    # 128 lanes x S overflows VMEM (extremely long sequences).
    max_c = max(max_c, 128)
    half = _round_up(pl.cdiv(BF, 2), 128)   # >= 2 grid steps (v7x dual-TC)
    return max(min(1024, max_c, half), 128)


def _pick_row_tile(S, B, F, E, vmem_limit):
    """Rows (= seq*batch) per block for pass 2: multiple of lcm(B, 8) so the
    tiled stats stay aligned and sublanes are dense, sized from the VMEM
    budget (target 4096 rows), capped so the grid has >= 2 steps."""
    SB = S * B
    step = B * 8 // math.gcd(B, 8)            # lcm(B, 8)
    if SB <= step:
        return SB
    resident = 2 * (2 * F * E) + 4 * E        # bf16 Wc + Wn, f32 bias
    budget = max(vmem_limit * 3 // 4 - resident, step * 64)
    per_row = 4 * (2 * F                      # x block, double-buffered
                   + 2 * E                    # out block, double-buffered
                   + 2 * F)                   # mean_t + rstd_t (resident)
    max_rows = max(budget // per_row, step)
    tile_r = min(4096, max_rows, SB)
    half = _round_up(pl.cdiv(SB, 2), step)    # >= 2 grid steps (v7x dual-TC)
    tile_r = min(tile_r, half)
    return max(tile_r // step * step, step)


# ----------------------------------------------------------------------------
# Wrapper (reshapes / weight split / param plumbing stay in plain JAX).
# ----------------------------------------------------------------------------
def nan_handling_encoder(x, weight, bias):
    """x: (S, B, F) f32; weight: (E, 2F); bias: (E,). Returns (S, B, E) f32."""
    S, B, F = x.shape
    E = weight.shape[0]
    x = x.astype(jnp.float32)
    BF = B * F
    SB = S * B
    vmem_limit = _vmem_limit_bytes()

    # ---------------- pass 1: indicator stats over the sequence axis ----------
    tile_c = _pick_col_tile(S, BF, vmem_limit)
    x_cols = x.reshape(S, BF)
    mean, rstd = pl.pallas_call(
        _stats_kernel,
        grid=(pl.cdiv(BF, tile_c),),
        in_specs=[pl.BlockSpec((S, tile_c), lambda j: (0, j))],
        out_specs=(pl.BlockSpec((1, tile_c), lambda j: (0, j)),
                   pl.BlockSpec((1, tile_c), lambda j: (0, j))),
        out_shape=(jax.ShapeDtypeStruct((1, BF), jnp.float32),
                   jax.ShapeDtypeStruct((1, BF), jnp.float32)),
        compiler_params=pltpu.CompilerParams(
            dimension_semantics=("parallel",),
            vmem_limit_bytes=vmem_limit),
    )(x_cols)

    # ---------------- pass 2: fused encode (split weight, no HBM concat) ------
    tile_r = _pick_row_tile(S, B, F, E, vmem_limit)
    reps = tile_r // B
    # Stats tiled once (tiny) so every row of a block lines up with its (b, f)
    # stats; blocks start at multiples of tile_r (a multiple of B), so the
    # row-within-block index mod B selects the right batch entry.
    mean_t = jnp.tile(mean.reshape(B, F), (reps, 1))   # (tile_r, F)
    rstd_t = jnp.tile(rstd.reshape(B, F), (reps, 1))
    wc = weight[:, :F].T.astype(jnp.bfloat16)          # (F, E) — clean half
    wn = weight[:, F:].T.astype(jnp.bfloat16)          # (F, E) — indicator half
    b_row = bias.astype(jnp.float32).reshape(1, E)
    x_rows = x.reshape(SB, F)

    out = pl.pallas_call(
        _encode_kernel,
        grid=(pl.cdiv(SB, tile_r),),
        in_specs=[pl.BlockSpec((tile_r, F), lambda i: (i, 0)),   # x rows (tiled)
                  pl.BlockSpec((tile_r, F), lambda i: (0, 0)),   # mean   (resident)
                  pl.BlockSpec((tile_r, F), lambda i: (0, 0)),   # rstd   (resident)
                  pl.BlockSpec((F, E), lambda i: (0, 0)),        # Wc     (resident)
                  pl.BlockSpec((F, E), lambda i: (0, 0)),        # Wn     (resident)
                  pl.BlockSpec((1, E), lambda i: (0, 0))],       # bias   (resident)
        out_specs=pl.BlockSpec((tile_r, E), lambda i: (i, 0)),
        out_shape=jax.ShapeDtypeStruct((SB, E), jnp.float32),
        compiler_params=pltpu.CompilerParams(
            dimension_semantics=("parallel",),
            vmem_limit_bytes=vmem_limit),
    )(x_rows, mean_t, rstd_t, wc, wn, b_row)

    return out.reshape(S, B, E)


# ----------------------------------------------------------------------------
# Pure-JAX reference (same math; emulates the kernel's bf16-operand matmul).
# ----------------------------------------------------------------------------
def _reference(x, weight, bias):
    S = x.shape[0]
    is_nan = jnp.isnan(x)
    is_inf = jnp.isinf(x)
    clean = jnp.clip(jnp.where(is_nan, 0.0, x), -_BF16_MAX, _BF16_MAX)
    ind = jnp.where(is_nan, -1.0,
                    jnp.where(is_inf, jnp.where(x > 0, 1.0, 2.0),
                              0.0)).astype(jnp.float32)
    mean = jnp.mean(ind, axis=0, keepdims=True)
    var = jnp.sum((ind - mean) ** 2, axis=0, keepdims=True) / max(S - 1, 1)
    std = jnp.sqrt(var) + 1e-6
    norm = jnp.clip((ind - mean) / std, -100.0, 100.0)
    feats = jnp.concatenate([clean, norm], axis=-1)
    return jnp.einsum("sbf,ef->sbe",
                      feats.astype(jnp.bfloat16), weight.astype(jnp.bfloat16),
                      preferred_element_type=jnp.float32) + bias


if __name__ == "__main__":
    S, B, F, E = 8, 2, 4, 32   # seq, batch, num_features, emsize

    key = jax.random.PRNGKey(0)
    kx, kw, kb = jax.random.split(key, 3)

    x = jax.random.normal(kx, (S, B, F), dtype=jnp.float32)
    # inject nan / +inf / -inf to exercise the handling path
    x = x.at[0, 0, 1].set(jnp.nan)
    x = x.at[2, 1, 3].set(jnp.inf)
    x = x.at[5, 0, 0].set(-jnp.inf)
    x = x.at[7, 1, 2].set(jnp.nan)

    # nn.Linear(2*F, E) init: U(-1/sqrt(in), 1/sqrt(in)) — deterministic in-script
    bound = 1.0 / math.sqrt(2 * F)
    weight = jax.random.uniform(kw, (E, 2 * F), jnp.float32, -bound, bound)
    bias = jax.random.uniform(kb, (E,), jnp.float32, -bound, bound)

    out = jax.block_until_ready(nan_handling_encoder(x, weight, bias))
    ref = _reference(x, weight, bias)

    assert out.shape == (S, B, E), out.shape
    assert bool(jnp.all(jnp.isfinite(out))), "non-finite values in kernel output"
    assert jnp.allclose(out, ref, rtol=1e-2, atol=1e-2), "mismatch vs reference"

    print("KERNEL_OK")
</pallas_src>

<mosaic_0001>
module attributes {stable_mosaic.version = 11 : i64} {
  func.func @_stats_kernel(%arg0: i32, %arg1: memref<8x8xf32, #tpu.memory_space<vmem>>, %arg2: memref<1x8xf32, #tpu.memory_space<vmem>>, %arg3: memref<1x8xf32, #tpu.memory_space<vmem>>) attributes {dimension_semantics = [#tpu.dimension_semantics<parallel>], iteration_bounds = array<i64: 1>, scalar_prefetch = 0 : i64, scratch_operands = 0 : i64, tpu.core_type = #tpu.core_type<tc>, window_params = [{transform_indices = @transform_0, window_bounds = array<i64: 8, 8>}, {transform_indices = @transform_1, window_bounds = array<i64: 1, 8>}, {transform_indices = @transform_2, window_bounds = array<i64: 1, 8>}]} {
    %c0 = arith.constant 0 : index
    %c0_0 = arith.constant 0 : index
    %0 = vector.load %arg1[%c0, %c0_0] : memref<8x8xf32, #tpu.memory_space<vmem>>, vector<8x8xf32>
    %1 = arith.cmpf one, %0, %0 : vector<8x8xf32>
    %2 = math.absf %0 : vector<8x8xf32>
    %cst = arith.constant 0x7F800000 : f32
    %3 = vector.broadcast %cst : f32 to vector<8x8xf32>
    %4 = arith.cmpf oeq, %2, %3 : vector<8x8xf32>
    %cst_1 = arith.constant 0.000000e+00 : f32
    %5 = vector.broadcast %cst_1 : f32 to vector<8x8xf32>
    %6 = arith.cmpf ogt, %0, %5 : vector<8x8xf32>
    %cst_2 = arith.constant 1.000000e+00 : f32
    %cst_3 = arith.constant 2.000000e+00 : f32
    %7 = vector.broadcast %cst_2 : f32 to vector<8x8xf32>
    %8 = vector.broadcast %cst_3 : f32 to vector<8x8xf32>
    %9 = arith.select %6, %7, %8 : vector<8x8xi1>, vector<8x8xf32>
    %cst_4 = arith.constant 0.000000e+00 : f32
    %10 = vector.broadcast %cst_4 : f32 to vector<8x8xf32>
    %11 = arith.select %4, %9, %10 : vector<8x8xi1>, vector<8x8xf32>
    %cst_5 = arith.constant -1.000000e+00 : f32
    %12 = vector.broadcast %cst_5 : f32 to vector<8x8xf32>
    %13 = arith.select %1, %12, %11 : vector<8x8xi1>, vector<8x8xf32>
    %cst_6 = arith.constant dense<0.000000e+00> : vector<8xf32>
    %14 = vector.multi_reduction <add>, %13, %cst_6 [0] : vector<8x8xf32> to vector<8xf32>
    %15 = vector.shape_cast %14 : vector<8xf32> to vector<1x8xf32>
    %cst_7 = arith.constant 8.000000e+00 : f32
    %16 = vector.broadcast %cst_7 : f32 to vector<1x8xf32>
    %17 = arith.divf %15, %16 : vector<1x8xf32>
    %18 = vector.broadcast %17 : vector<1x8xf32> to vector<8x8xf32>
    %19 = arith.subf %13, %18 : vector<8x8xf32>
    %20 = arith.mulf %19, %19 : vector<8x8xf32>
    %cst_8 = arith.constant dense<0.000000e+00> : vector<8xf32>
    %21 = vector.multi_reduction <add>, %20, %cst_8 [0] : vector<8x8xf32> to vector<8xf32>
    %22 = vector.shape_cast %21 : vector<8xf32> to vector<1x8xf32>
    %cst_9 = arith.constant 7.000000e+00 : f32
    %23 = vector.broadcast %cst_9 : f32 to vector<1x8xf32>
    %24 = arith.divf %22, %23 : vector<1x8xf32>
    %25 = math.sqrt %24 : vector<1x8xf32>
    %cst_10 = arith.constant 9.99999997E-7 : f32
    %26 = vector.broadcast %cst_10 : f32 to vector<1x8xf32>
    %27 = arith.addf %25, %26 : vector<1x8xf32>
    %c0_11 = arith.constant 0 : index
    %c0_12 = arith.constant 0 : index
    %28 = vector.load %arg2[%c0_11, %c0_12] : memref<1x8xf32, #tpu.memory_space<vmem>>, vector<1x8xf32>
    tpu.vector_store %arg2[%c0_11, %c0_12], %17 {strides = array<i32>} : memref<1x8xf32, #tpu.memory_space<vmem>>, vector<1x8xf32>,
    %cst_13 = arith.constant 1.000000e+00 : f32
    %29 = vector.broadcast %cst_13 : f32 to vector<1x8xf32>
    %30 = arith.divf %29, %27 : vector<1x8xf32>
    %c0_14 = arith.constant 0 : index
    %c0_15 = arith.constant 0 : index
    %31 = vector.load %arg3[%c0_14, %c0_15] : memref<1x8xf32, #tpu.memory_space<vmem>>, vector<1x8xf32>
    tpu.vector_store %arg3[%c0_14, %c0_15], %30 {strides = array<i32>} : memref<1x8xf32, #tpu.memory_space<vmem>>, vector<1x8xf32>,
    return
  }
  func.func @transform_0(%arg0: i32) -> (i32, i32) {
    %c0_i32 = arith.constant 0 : i32
    %c0_i32_0 = arith.constant 0 : i32
    return %c0_i32, %arg0 : i32, i32
  }
  func.func @transform_1(%arg0: i32) -> (i32, i32) {
    %c0_i32 = arith.constant 0 : i32
    %c0_i32_0 = arith.constant 0 : i32
    return %c0_i32, %arg0 : i32, i32
  }
  func.func @transform_2(%arg0: i32) -> (i32, i32) {
    %c0_i32 = arith.constant 0 : i32
    %c0_i32_0 = arith.constant 0 : i32
    return %c0_i32, %arg0 : i32, i32
  }
}

</mosaic_0001>

<llo_original>
// kernel: tpu_custom_call.1
$region0: #{tpu_custom_call.1}
  #allocation0 [shape = 'u32[]', space=smem, size = 0x4, offset = 0x4, fixed_abs, tag = 'smem constant byte address 0x4 - core index']
  #allocation1 [shape = 'u32[144,128]{1,0:T(1,128)}', space=vmem, size = 0x12000, scoped, tag = 'internal scratch']
  %s0 = inlined_call_operand.hbm [shape: f32[8,8], index: 0, kind: input, shape index: {}]
  %s1 = inlined_call_operand.hbm [shape: f32[1,8], index: 1, kind: output, shape index: {0}]
  %s2 = inlined_call_operand.hbm [shape: f32[1,8], index: 2, kind: output, shape index: {1}]
  %3 = xla_tuple %s1, %s2
  %s4 = sld [smem:[#allocation0]]
  $region26: #{tpu_custom_call.1} parent=0
    _
  %s6 = ssub.s32 1, %s4
  %s7 = scalar_select 0, %s6, %s4
  $region1: #{tpu_custom_call.1} parent=0
    #allocation2 [shape = 'u8[4096]{0}', space=vmem, size = 0x1000, scoped, tag = 'input window, operand 0, single buffered']
    #allocation3 [shape = 's32[1]{0}', space=sflag, size = 0x4, scoped, tag = 'scoped memory for tpu_custom_call.1']
    #allocation4 [shape = 's32[1]{0}', space=sflag, size = 0x4, scoped, tag = 'scoped memory for tpu_custom_call.1']
    #allocation5 [shape = 'u8[512]{0}', space=vmem, size = 0x400, scoped, tag = 'output window, operand 0, single buffered']
    #allocation6 [shape = 'u8[512]{0}', space=vmem, size = 0x400, scoped, tag = 'output window, operand 1, single buffered']
    #allocation7 [shape = 's32[1]{0}', space=sflag, size = 0x4, scoped, tag = 'scoped memory for tpu_custom_call.1']
    %8 = vsyncpa [#allocation3], 0
    %9 = vsyncpa [#allocation4], 0
    %10 = vsyncpa [#allocation7], 0
    // Predicated region
    $region2: #{tpu_custom_call.1} parent=1 // pred_check
      _
    $region3: #{tpu_custom_call.1} parent=1 // pred_check_branch
      %12 = sbr.rel (0) target = $region5
    $region4: #{tpu_custom_call.1} parent=1 // pred_region
      %s14 = ssub.s32 128, 128
      %15 = vsyncadd [#allocation3], %s14
      %s17 = sshll.u32 [#allocation2], 4
      %s18 = int_to_ptr.vmem [resolvable:$true] %s17
      %20 = dma.hbm_to_vmem [thread:$0]  %s0, 128, %s18, [#allocation3]
    $region5: #{tpu_custom_call.1} parent=1 // pred_fallthru
      _
    // Predicated region
    $region6: #{tpu_custom_call.1} parent=1 // pred_check
      _
    $region7: #{tpu_custom_call.1} parent=1 // pred_check_branch
      %22 = sbr.rel (0) target = $region9
    $region8: #{tpu_custom_call.1} parent=1 // pred_region
      %23 = dma.done [#allocation3], 128
    $region9: #{tpu_custom_call.1} parent=1 // pred_fallthru
      _
    %v24 = vld [vmem:[#allocation2] sm:$0xff]
    %vm25 = vcmp.ne.f32.partialorder %v24, %v24
    %v26 = vand.u32 2147483647, %v24
    %vm27 = vcmp.eq.f32.partialorder %v26, inf
    %vm28 = vcmp.gt.f32.partialorder %v24, 0.0
    %v29 = vsel %vm28, 1.0, 2.0
    %v30 = vsel %vm27, %v29, 0.0
    %v31 = vsel %vm25, -1.0, %v30
    %vm32 = vcmask 64512
    %v33 = vsel %vm32, %v31, 0.0
    %v34 = vrot.slane %v33, 4
    %v35 = vadd.f32 %v33, %v34
    %v36 = vrot.slane %v35, 2
    %v37 = vadd.f32 %v35, %v36
    %v38 = vrot.slane %v37, 1
    %v39 = vadd.f32 %v37, %v38
    %v40 = vrcp.pop 8.0
    %v41 = vmul.f32 %v39, %v40
    %v42 = vsub.f32 %v31, %v41
    %v43 = vmul.f32 %v42, %v42
    %v44 = vsel %vm32, %v43, 0.0
    %v45 = vrot.slane %v44, 4
    %v46 = vadd.f32 %v44, %v45
    %v47 = vrot.slane %v46, 2
    %v48 = vadd.f32 %v46, %v47
    %v49 = vrot.slane %v48, 1
    %v50 = vadd.f32 %v48, %v49
    %v51 = vrcp.pop 7.0
    %v52 = vmul.f32 %v50, %v51
    %v53 = vrsqrt.pop %v52
    %v54 = vmul.f32 %v52, %v53
    %vm55 = vcmp.eq.f32.partialorder %v52, inf
    %v56 = vsel %vm55, %v52, %v54
    %vm57 = vcmp.eq.f32.partialorder %v52, 0.0
    %v58 = vand.u32 %v52, 2147483648
    %v59 = vsel %vm57, %v58, %v56
    %v60 = vadd.f32 %v59, 1e-06
    %vm61 = vcmask 57344
    %62 = vst.msk [vmem:[#allocation5] sm:$0x1] %vm61, %v41
    %v63 = vrcp.pop %v60
    %v64 = vmul.f32 1.0, %v63
    %65 = vst.msk [vmem:[#allocation6] sm:$0x1] %vm61, %v64
    // Predicated region
    $region10: #{tpu_custom_call.1} parent=1 // pred_check
      _
    $region11: #{tpu_custom_call.1} parent=1 // pred_check_branch
      %67 = sbr.rel (0) target = $region13
    $region12: #{tpu_custom_call.1} parent=1 // pred_region
      %s69 = ssub.s32 16, 16
      %70 = vsyncadd [#allocation4], %s69
      %s72 = sshll.u32 [#allocation5], 4
      %s73 = int_to_ptr.vmem [resolvable:$true] %s72
      %75 = dma.vmem_to_hbm [thread:$0]  %s73, 16, %s1, [#allocation4]
    $region13: #{tpu_custom_call.1} parent=1 // pred_fallthru
      _
    // Predicated region
    $region14: #{tpu_custom_call.1} parent=1 // pred_check
      _
    $region15: #{tpu_custom_call.1} parent=1 // pred_check_branch
      %77 = sbr.rel (0) target = $region17
    $region16: #{tpu_custom_call.1} parent=1 // pred_region
      %s79 = ssub.s32 16, 16
      %80 = vsyncadd [#allocation7], %s79
      %s82 = sshll.u32 [#allocation6], 4
      %s83 = int_to_ptr.vmem [resolvable:$true] %s82
      %85 = dma.vmem_to_hbm [thread:$0]  %s83, 16, %s2, [#allocation7]
    $region17: #{tpu_custom_call.1} parent=1 // pred_fallthru
      _
    // Predicated region
    $region18: #{tpu_custom_call.1} parent=1 // pred_check
      _
    $region19: #{tpu_custom_call.1} parent=1 // pred_check_branch
      %87 = sbr.rel (0) target = $region21
    $region20: #{tpu_custom_call.1} parent=1 // pred_region
      %88 = dma.done [#allocation4], 16
    $region21: #{tpu_custom_call.1} parent=1 // pred_fallthru
      _
    // Predicated region
    $region22: #{tpu_custom_call.1} parent=1 // pred_check
      _
    $region23: #{tpu_custom_call.1} parent=1 // pred_check_branch
      %90 = sbr.rel (0) target = $region25
    $region24: #{tpu_custom_call.1} parent=1 // pred_region
      %91 = dma.done [#allocation7], 16
    $region25: #{tpu_custom_call.1} parent=1 // pred_fallthru
      _
    %92 = vsyncpa [#allocation3], 1
    %93 = vsyncpa [#allocation4], 1
    %94 = vsyncpa [#allocation7], 1

</llo_original>
